<compile_context>
chip_gen: v5e
topology: v5e:2x2
jax: 0.10.0
libtpu: 0.0.40
codegen_flags: <defaults>
</compile_context>

<pallas_src>
import jax
import jax.numpy as jnp
from jax.experimental import pallas as pl
from jax.experimental.pallas import tpu as pltpu


def soft_target_cross_entropy(x, target):
    """x: (N, C) logits, target: (N, C) soft labels -> scalar f32 loss."""
    N, C = x.shape
    assert target.shape == (N, C)

    # ---- tile sizing: ~2 MiB per input block, based on the physical (lane-padded) width ----
    c_lanes = ((C + 127) // 128) * 128
    itemsize = max(jnp.dtype(x.dtype).itemsize, jnp.dtype(target.dtype).itemsize)
    tile_rows = (2 * 1024 * 1024) // (c_lanes * itemsize)
    tile_rows = max(8, min(1024, (tile_rows // 8) * 8))        # sublane multiple of 8
    tile_rows = min(tile_rows, ((N + 7) // 8) * 8)             # no bigger than the batch
    # TODO(synk): for very large C (a single (8, C) block exceeds a few MiB) add a second
    # grid axis over C with an online logsumexp carry so tile_rows can stay large.

    num_tiles = pl.cdiv(N, tile_rows)
    need_row_mask = (N % tile_rows) != 0

    def kernel(x_ref, t_ref, o_ref):
        # x_ref, t_ref: (tile_rows, C) VMEM tiles; o_ref: (1, 1) SMEM partial-loss scalar.
        x_t = x_ref[...].astype(jnp.float32)
        t_t = t_ref[...].astype(jnp.float32)

        if need_row_mask:
            # Rows >= N in the last tile hold unspecified data; zero both operands so those
            # rows contribute exactly 0 (t==0 kills the product, x==0 keeps m/lse finite).
            row = (jax.lax.broadcasted_iota(jnp.int32, (tile_rows, 1), 0)
                   + pl.program_id(0) * tile_rows)
            valid = row < N
            x_t = jnp.where(valid, x_t, 0.0)
            t_t = jnp.where(valid, t_t, 0.0)

        # sum_c(-t * log_softmax(x)) == (m + lse) * sum_c(t) - sum_c(t * x)
        m = jnp.max(x_t, axis=-1, keepdims=True)
        lse = jnp.log(jnp.sum(jnp.exp(x_t - m), axis=-1, keepdims=True))
        t_sum = jnp.sum(t_t, axis=-1, keepdims=True)
        tx_sum = jnp.sum(t_t * x_t, axis=-1, keepdims=True)

        o_ref[0, 0] = jnp.sum((m + lse) * t_sum - tx_sum)      # partial loss for this tile

    partials = pl.pallas_call(
        kernel,
        out_shape=jax.ShapeDtypeStruct((num_tiles, 1), jnp.float32),
        grid_spec=pltpu.PrefetchScalarGridSpec(
            num_scalar_prefetch=0,
            grid=(num_tiles,),
            in_specs=[
                pl.BlockSpec((tile_rows, C), lambda i: (i, 0)),
                pl.BlockSpec((tile_rows, C), lambda i: (i, 0)),
            ],
            out_specs=pl.BlockSpec((1, 1), lambda i: (i, 0),
                                   memory_space=pltpu.MemorySpace.SMEM),
        ),
        compiler_params=pltpu.CompilerParams(
            dimension_semantics=("parallel",),      # disjoint per-step outputs, no carry
            vmem_limit_bytes=48 * 1024 * 1024,      # headroom under v7x's 64 MiB VMEM
        ),
    )(x, target)

    # Tiny final reduce + mean in plain JAX (num_tiles values).
    return jnp.sum(partials) / jnp.float32(N)


if __name__ == "__main__":
    key = jax.random.PRNGKey(0)
    kx, kt = jax.random.split(key)

    # small shape consistent with the module (stand-in for fake_label_4.npy soft labels)
    N, C = 8, 32
    x = jax.random.normal(kx, (N, C), dtype=jnp.float32)
    target = jax.nn.softmax(jax.random.normal(kt, (N, C), dtype=jnp.float32), axis=-1)

    loss = jax.block_until_ready(soft_target_cross_entropy(x, target))
    ref = jnp.mean(jnp.sum(-target * jax.nn.log_softmax(x, axis=-1), axis=-1))
    assert jnp.allclose(loss, ref, atol=1e-5, rtol=1e-5), (loss, ref)

    # non-8-multiple N and non-128-multiple C exercise the in-kernel row mask + ragged lanes
    k2x, k2t = jax.random.split(jax.random.PRNGKey(1))
    N2, C2 = 6, 200
    x2 = jax.random.normal(k2x, (N2, C2), dtype=jnp.float32)
    t2 = jax.nn.softmax(jax.random.normal(k2t, (N2, C2), dtype=jnp.float32), axis=-1)
    loss2 = jax.block_until_ready(soft_target_cross_entropy(x2, t2))
    ref2 = jnp.mean(jnp.sum(-t2 * jax.nn.log_softmax(x2, axis=-1), axis=-1))
    assert jnp.allclose(loss2, ref2, atol=1e-5, rtol=1e-5), (loss2, ref2)

    print("KERNEL_OK")
</pallas_src>

<mosaic_0001>
module attributes {stable_mosaic.version = 11 : i64} {
  func.func @kernel(%arg0: i32, %arg1: memref<8x32xf32, #tpu.memory_space<vmem>>, %arg2: memref<8x32xf32, #tpu.memory_space<vmem>>, %arg3: memref<1x1xf32, #tpu.memory_space<smem>>) attributes {dimension_semantics = [#tpu.dimension_semantics<parallel>], iteration_bounds = array<i64: 1>, scalar_prefetch = 0 : i64, scratch_operands = 0 : i64, tpu.core_type = #tpu.core_type<tc>, window_params = [{transform_indices = @transform_0, window_bounds = array<i64: 8, 32>}, {transform_indices = @transform_1, window_bounds = array<i64: 8, 32>}, {transform_indices = @transform_2, window_bounds = array<i64: 1, 1>}]} {
    %c0 = arith.constant 0 : index
    %c0_0 = arith.constant 0 : index
    %0 = vector.load %arg1[%c0, %c0_0] : memref<8x32xf32, #tpu.memory_space<vmem>>, vector<8x32xf32>
    %c0_1 = arith.constant 0 : index
    %c0_2 = arith.constant 0 : index
    %1 = vector.load %arg2[%c0_1, %c0_2] : memref<8x32xf32, #tpu.memory_space<vmem>>, vector<8x32xf32>
    %cst = arith.constant dense<0xFF800000> : vector<8xf32>
    %2 = vector.multi_reduction <maximumf>, %0, %cst [1] : vector<8x32xf32> to vector<8xf32>
    %3 = vector.shape_cast %2 : vector<8xf32> to vector<8x1xf32>
    %4 = vector.broadcast %3 : vector<8x1xf32> to vector<8x32xf32>
    %5 = arith.subf %0, %4 : vector<8x32xf32>
    %6 = math.exp %5 : vector<8x32xf32>
    %cst_3 = arith.constant dense<0.000000e+00> : vector<8xf32>
    %7 = vector.multi_reduction <add>, %6, %cst_3 [1] : vector<8x32xf32> to vector<8xf32>
    %8 = vector.shape_cast %7 : vector<8xf32> to vector<8x1xf32>
    %9 = math.log %8 : vector<8x1xf32>
    %cst_4 = arith.constant dense<0.000000e+00> : vector<8xf32>
    %10 = vector.multi_reduction <add>, %1, %cst_4 [1] : vector<8x32xf32> to vector<8xf32>
    %11 = vector.shape_cast %10 : vector<8xf32> to vector<8x1xf32>
    %12 = arith.mulf %1, %0 : vector<8x32xf32>
    %cst_5 = arith.constant dense<0.000000e+00> : vector<8xf32>
    %13 = vector.multi_reduction <add>, %12, %cst_5 [1] : vector<8x32xf32> to vector<8xf32>
    %14 = vector.shape_cast %13 : vector<8xf32> to vector<8x1xf32>
    %15 = arith.addf %3, %9 : vector<8x1xf32>
    %16 = arith.mulf %15, %11 : vector<8x1xf32>
    %17 = arith.subf %16, %14 : vector<8x1xf32>
    %18 = vector.shape_cast %17 : vector<8x1xf32> to vector<1x8x1xf32>
    %cst_6 = arith.constant dense<0.000000e+00> : vector<1xf32>
    %19 = vector.multi_reduction <add>, %18, %cst_6 [1, 2] : vector<1x8x1xf32> to vector<1xf32>
    %20 = vector.shape_cast %19 : vector<1xf32> to vector<1x1x1xf32>
    %21 = vector.extract %20[0, 0, 0] : f32 from vector<1x1x1xf32>
    %c0_7 = arith.constant 0 : index
    %c0_8 = arith.constant 0 : index
    %22 = memref.load %arg3[%c0_7, %c0_8] : memref<1x1xf32, #tpu.memory_space<smem>>
    memref.store %21, %arg3[%c0_7, %c0_8] : memref<1x1xf32, #tpu.memory_space<smem>>
    return
  }
  func.func @transform_0(%arg0: i32) -> (i32, i32) {
    %c0_i32 = arith.constant 0 : i32
    %c0_i32_0 = arith.constant 0 : i32
    return %arg0, %c0_i32 : i32, i32
  }
  func.func @transform_1(%arg0: i32) -> (i32, i32) {
    %c0_i32 = arith.constant 0 : i32
    %c0_i32_0 = arith.constant 0 : i32
    return %arg0, %c0_i32 : i32, i32
  }
  func.func @transform_2(%arg0: i32) -> (i32, i32) {
    %c0_i32 = arith.constant 0 : i32
    %c0_i32_0 = arith.constant 0 : i32
    return %arg0, %c0_i32 : i32, i32
  }
}

</mosaic_0001>

<llo_original>
// kernel: tpu_custom_call.1
$region0: #{tpu_custom_call.1}
  #allocation0 [shape = 'u32[]', space=smem, size = 0x4, offset = 0x4, fixed_abs, tag = 'smem constant byte address 0x4 - core index']
  #allocation1 [shape = 'u32[72,128]{1,0:T(1,128)}', space=vmem, size = 0x9000, scoped, tag = 'internal scratch']
  %s0 = inlined_call_operand.hbm [shape: f32[8,32], index: 0, kind: input, shape index: {}]
  %s1 = inlined_call_operand.hbm [shape: f32[8,32], index: 1, kind: input, shape index: {}]
  %s2 = inlined_call_operand.hbm [shape: f32[1,1], index: 2, kind: output, shape index: {}]
  %s3 = sld [smem:[#allocation0]]
  $region26: #{tpu_custom_call.1} parent=0
    _
  %s5 = ssub.s32 1, %s3
  %s6 = scalar_select 0, %s5, %s3
  $region1: #{tpu_custom_call.1} parent=0
    #allocation2 [shape = 'u8[4096]{0}', space=vmem, size = 0x1000, scoped, tag = 'input window, operand 0, single buffered']
    #allocation3 [shape = 's32[1]{0}', space=sflag, size = 0x4, scoped, tag = 'scoped memory for tpu_custom_call.1']
    #allocation4 [shape = 's32[1]{0}', space=sflag, size = 0x4, scoped, tag = 'scoped memory for tpu_custom_call.1']
    #allocation5 [shape = 'u8[4096]{0}', space=vmem, size = 0x1000, scoped, tag = 'input window, operand 1, single buffered']
    #allocation6 [shape = 's32[1]{0}', space=sflag, size = 0x4, scoped, tag = 'scoped memory for tpu_custom_call.1']
    #allocation7 [shape = 'u8[512]{0}', space=smem, size = 0x200, scoped, tag = 'output window, operand 0, single buffered']
    %7 = vsyncpa [#allocation3], 0
    %8 = vsyncpa [#allocation6], 0
    %9 = vsyncpa [#allocation4], 0
    // Predicated region
    $region2: #{tpu_custom_call.1} parent=1 // pred_check
      _
    $region3: #{tpu_custom_call.1} parent=1 // pred_check_branch
      %11 = sbr.rel (0) target = $region5
    $region4: #{tpu_custom_call.1} parent=1 // pred_region
      %13 = vsyncadd [#allocation3], 0
      %s15 = sshll.u32 %s0, 4
      %s16 = int_to_ptr.hbm [resolvable:$true] %s15
      %s17 = sshll.u32 [#allocation2], 4
      %s18 = int_to_ptr.vmem [resolvable:$true] %s17
      %20 = dma.hbm_to_vmem [thread:$0]  %s16, 128, %s18, [#allocation3]
    $region5: #{tpu_custom_call.1} parent=1 // pred_fallthru
      _
    // Predicated region
    $region6: #{tpu_custom_call.1} parent=1 // pred_check
      _
    $region7: #{tpu_custom_call.1} parent=1 // pred_check_branch
      %22 = sbr.rel (0) target = $region9
    $region8: #{tpu_custom_call.1} parent=1 // pred_region
      %24 = vsyncadd [#allocation6], 0
      %s26 = sshll.u32 %s1, 4
      %s27 = int_to_ptr.hbm [resolvable:$true] %s26
      %s28 = sshll.u32 [#allocation5], 4
      %s29 = int_to_ptr.vmem [resolvable:$true] %s28
      %31 = dma.hbm_to_vmem [thread:$0]  %s27, 128, %s29, [#allocation6]
    $region9: #{tpu_custom_call.1} parent=1 // pred_fallthru
      _
    // Predicated region
    $region10: #{tpu_custom_call.1} parent=1 // pred_check
      _
    $region11: #{tpu_custom_call.1} parent=1 // pred_check_branch
      %33 = sbr.rel (0) target = $region13
    $region12: #{tpu_custom_call.1} parent=1 // pred_region
      %35 = dma.done [#allocation3], 128
    $region13: #{tpu_custom_call.1} parent=1 // pred_fallthru
      _
    // Predicated region
    $region14: #{tpu_custom_call.1} parent=1 // pred_check
      _
    $region15: #{tpu_custom_call.1} parent=1 // pred_check_branch
      %37 = sbr.rel (0) target = $region17
    $region16: #{tpu_custom_call.1} parent=1 // pred_region
      %39 = dma.done [#allocation6], 128
    $region17: #{tpu_custom_call.1} parent=1 // pred_fallthru
      _
    %v40 = vld [vmem:[#allocation2] sm:$0xff]
    %v41 = vld [vmem:[#allocation5] sm:$0xff]
    %vm42 = vcmask 261120
    %v43 = vsel %vm42, %v40, -inf
    %44 = vmax.xlane.f32.xlu0 %v43
    %v45 = vpop.xlane.xlu0 %44
    %v46 = vsub.f32 %v40, %v45
    %v47 = vmul.f32 %v46, 1.442695
    %v48 = vpow.pop %v47
    %v49 = vsel %vm42, %v48, 0.0
    %50 = vadd.xlane.f32.xlu0 %v49
    %v51 = vpop.xlane.xlu0 %50
    %v52 = vlog2.pop %v51
    %v53 = vmul.f32 %v52, 0.6931472
    %v54 = vsel %vm42, %v41, 0.0
    %55 = vadd.xlane.f32.xlu0 %v54
    %v56 = vpop.xlane.xlu0 %55
    %v57 = vmul.f32 %v41, %v40
    %v58 = vsel %vm42, %v57, 0.0
    %59 = vadd.xlane.f32.xlu0 %v58
    %v60 = vpop.xlane.xlu0 %59
    %v61 = vadd.f32 %v45, %v53
    %v62 = vmul.f32 %v61, %v56
    %v63 = vsub.f32 %v62, %v60
    %vm64 = vcmask 7168
    %v65 = vsel %vm64, %v63, 0.0
    %66 = vadd.xlane.f32.xlu0 %v65
    %v67 = vpop.xlane.xlu0 %66
    %v68 = vrot.slane %v67, 4
    %v69 = vadd.f32 %v67, %v68
    %v70 = vrot.slane %v69, 2
    %v71 = vadd.f32 %v69, %v70
    %v72 = vrot.slane %v71, 1
    %v73 = vadd.f32 %v71, %v72
    %s74 = vtos %v73
    %s75 = scalar_lea.smem [#allocation7], 0
    %76 = sst [smem:[%s75]] %s74
    // Predicated region
    $region18: #{tpu_custom_call.1} parent=1 // pred_check
      _
    $region19: #{tpu_custom_call.1} parent=1 // pred_check_branch
      %78 = sbr.rel (0) target = $region21
    $region20: #{tpu_custom_call.1} parent=1 // pred_region
      %80 = vsyncadd [#allocation4], 0
      %s82 = sshll.u32 %s2, 4
      %s83 = int_to_ptr.hbm [resolvable:$true] %s82
      %85 = dma.smem_to_hbm [#allocation7], 16, %s83, [#allocation4]
    $region21: #{tpu_custom_call.1} parent=1 // pred_fallthru
      _
    // Predicated region
    $region22: #{tpu_custom_call.1} parent=1 // pred_check
      _
    $region23: #{tpu_custom_call.1} parent=1 // pred_check_branch
      %87 = sbr.rel (0) target = $region25
    $region24: #{tpu_custom_call.1} parent=1 // pred_region
      %89 = dma.done [#allocation4], 16
    $region25: #{tpu_custom_call.1} parent=1 // pred_fallthru
      _
    %90 = sfence
    %91 = vsyncpa [#allocation3], 1
    %92 = vsyncpa [#allocation6], 1
    %93 = vsyncpa [#allocation4], 1

</llo_original>
